<compile_context>
chip_gen: v6e
topology: v6e:2x2x1
jax: 0.10.0
libtpu: 0.0.40
codegen_flags: <defaults>
</compile_context>

<pallas_src>
import jax
import jax.numpy as jnp
from jax.experimental import pallas as pl
from jax.experimental.pallas import tpu as pltpu

B_CONST = 0.3      # self.b
TAU_A = 8.0        # self.tau_a


# ----------------------------------------------------------------------------
# Kernel: one grid step == one RNN timestep for one batch block.
# ----------------------------------------------------------------------------
def _adapting_rnn_seq_kernel(x_ref, int_ref, h0_ref, a0_ref, w_ref, bias_ref,
                             out_ref, xh_scr, a_scr):
    t = pl.program_id(1)
    in_size = x_ref.shape[-1]
    hidden = a_scr.shape[-1]

    # Initialize the carried state at the first timestep of this batch block.
    @pl.when(t == 0)
    def _():
        xh_scr[:, pl.ds(in_size, hidden)] = h0_ref[...].astype(xh_scr.dtype)
        a_scr[...] = a0_ref[...].astype(a_scr.dtype)

    # Stream the current input into the left half of the fused activation
    # buffer (right half already holds h_{t-1}).
    xh_scr[:, pl.ds(0, in_size)] = x_ref[0].astype(xh_scr.dtype)

    hx = xh_scr[:, pl.ds(in_size, hidden)]
    ax = a_scr[...]

    # Single fused MXU matmul: [x_t, h_{t-1}] @ [W_ih^T ; W_hh^T]
    x = jnp.dot(xh_scr[...], w_ref[...], preferred_element_type=jnp.float32)

    # ay = ax * (1 - 1/tau_a) + (b/tau_a) * hx
    ay = ax * (1.0 - 1.0 / TAU_A) + (B_CONST / TAU_A) * hx
    # hy = relu(x + internal + bias - ax)
    hy = jnp.maximum(x + int_ref[0] + bias_ref[...] - ax, 0.0)

    # Combined lane-dense output slab: [.., :H] = hy, [.., H:] = ay
    out_ref[0, :, pl.ds(0, hidden)] = hy.astype(out_ref.dtype)
    out_ref[0, :, pl.ds(hidden, hidden)] = ay.astype(out_ref.dtype)

    # Carry state to the next timestep.
    xh_scr[:, pl.ds(in_size, hidden)] = hy
    a_scr[...] = ay


# ----------------------------------------------------------------------------
# Parameter preparation (done ONCE, outside the per-step / per-sequence path).
# ----------------------------------------------------------------------------
def stack_params(weight_ih, weight_hh, bias):
    """weight_ih: [H, IN], weight_hh: [H, H], bias: [H] ->
       (w_cat [IN+H, H], bias2d [1, H])."""
    w_cat = jnp.concatenate([weight_ih.T, weight_hh.T], axis=0)
    bias2d = bias.reshape(1, -1)
    return w_cat, bias2d


# ----------------------------------------------------------------------------
# Fused-sequence wrapper.
# ----------------------------------------------------------------------------
def adapting_rnn_sequence(inputs, internals, h0, a0, w_cat, bias2d,
                          *, batch_block=None):
    """Run the AdaptingRNNCell over a whole sequence in one pallas_call.

    inputs   : [T, B, input_size]
    internals: [T, B, hidden_size]
    h0, a0   : [B, hidden_size]
    w_cat    : [input_size + hidden_size, hidden_size]  (stacked, transposed)
    bias2d   : [1, hidden_size]
    Returns (hy_seq [T,B,H], ay_seq [T,B,H]).
    """
    T, B, in_size = inputs.shape
    hidden = bias2d.shape[-1]
    if batch_block is None:
        batch_block = B
    assert B % batch_block == 0
    nb = B // batch_block
    bb = batch_block

    out = pl.pallas_call(
        _adapting_rnn_seq_kernel,
        out_shape=jax.ShapeDtypeStruct((T, B, 2 * hidden), inputs.dtype),
        grid=(nb, T),
        in_specs=[
            pl.BlockSpec((1, bb, in_size), lambda b, t: (t, b, 0)),       # x_t
            pl.BlockSpec((1, bb, hidden), lambda b, t: (t, b, 0)),        # internal_t
            pl.BlockSpec((bb, hidden), lambda b, t: (b, 0)),              # h0
            pl.BlockSpec((bb, hidden), lambda b, t: (b, 0)),              # a0
            pl.BlockSpec((in_size + hidden, hidden), lambda b, t: (0, 0)),  # W (resident)
            pl.BlockSpec((1, hidden), lambda b, t: (0, 0)),               # bias (resident)
        ],
        out_specs=pl.BlockSpec((1, bb, 2 * hidden), lambda b, t: (t, b, 0)),
        scratch_shapes=[
            pltpu.VMEM((bb, in_size + hidden), jnp.float32),  # fused [x, h] activation
            pltpu.VMEM((bb, hidden), jnp.float32),            # adaptation state a
        ],
        compiler_params=pltpu.CompilerParams(
            dimension_semantics=("parallel", "arbitrary")),
    )(inputs, internals, h0, a0, w_cat, bias2d)

    hy_seq = out[..., :hidden]
    ay_seq = out[..., hidden:]
    return hy_seq, ay_seq


# ----------------------------------------------------------------------------
# Single-step wrapper: exact semantics of AdaptingRNNCell.forward.
# ----------------------------------------------------------------------------
def adapting_rnn_cell(inp, internal, state, w_cat, bias2d):
    """Returns (hy, (hy, ay)) like the PyTorch module."""
    hx, ax = state
    hy_seq, ay_seq = adapting_rnn_sequence(inp[None], internal[None], hx, ax,
                                           w_cat, bias2d)
    hy = hy_seq[0]
    ay = ay_seq[0]
    return hy, (hy, ay)


# ----------------------------------------------------------------------------
# Pure-JAX references (mirror the PyTorch code exactly).
# ----------------------------------------------------------------------------
def reference_cell(inp, internal, state, weight_ih, weight_hh, bias):
    hx, ax = state
    hp = jax.lax.Precision.HIGHEST
    i_input = jnp.dot(inp, weight_ih.T, precision=hp)
    h_input = jnp.dot(hx, weight_hh.T, precision=hp)
    x = i_input + h_input
    ay = ax * (1.0 - 1.0 / TAU_A) + (B_CONST / TAU_A) * hx
    hy = jnp.maximum(x + internal + bias - ax, 0.0)
    return hy, (hy, ay)


def reference_sequence(inputs, internals, h0, a0, weight_ih, weight_hh, bias):
    def step(carry, xs):
        x_t, int_t = xs
        hy, (h, a) = reference_cell(x_t, int_t, carry, weight_ih, weight_hh, bias)
        return (h, a), (hy, a)
    _, (hy_seq, ay_seq) = jax.lax.scan(step, (h0, a0), (inputs, internals))
    return hy_seq, ay_seq


if __name__ == "__main__":
    # Small shapes consistent with the module's forward.
    B = 8
    input_size = 32
    hidden_size = 32
    T = 12

    key = jax.random.PRNGKey(0)
    k1, k2, k3, k4, k5, k6 = jax.random.split(key, 6)

    # Deterministic parameter init matching __init__:
    rootk_i = (1.0 / input_size) ** 0.5
    rootk_h = (1.0 / hidden_size) ** 0.5
    weight_ih = jax.random.uniform(k1, (hidden_size, input_size),
                                   minval=-rootk_i, maxval=rootk_i,
                                   dtype=jnp.float32)
    weight_hh = jax.random.uniform(k2, (hidden_size, hidden_size),
                                   minval=-rootk_h, maxval=rootk_h,
                                   dtype=jnp.float32)
    bias = jnp.zeros((hidden_size,), dtype=jnp.float32)

    inputs = jax.random.normal(k3, (T, B, input_size), dtype=jnp.float32)
    internals = jax.random.normal(k4, (T, B, hidden_size), dtype=jnp.float32)
    h0 = jax.random.normal(k5, (B, hidden_size), dtype=jnp.float32)
    a0 = jax.random.normal(k6, (B, hidden_size), dtype=jnp.float32)

    # Parameter stacking done once (hoisted out of the hot path).
    w_cat, bias2d = stack_params(weight_ih, weight_hh, bias)
    w_cat, bias2d = jax.block_until_ready((w_cat, bias2d))

    # --- single step (module-exact forward) ---
    hy1, (hy1b, ay1) = adapting_rnn_cell(inputs[0], internals[0], (h0, a0),
                                         w_cat, bias2d)
    jax.block_until_ready((hy1, hy1b, ay1))
    hy1_ref, (_, ay1_ref) = reference_cell(inputs[0], internals[0], (h0, a0),
                                           weight_ih, weight_hh, bias)
    assert jnp.allclose(hy1, hy1_ref, atol=1e-4, rtol=1e-4), "single-step hy mismatch"
    assert jnp.allclose(ay1, ay1_ref, atol=1e-4, rtol=1e-4), "single-step ay mismatch"

    # --- fused full-sequence kernel (weights resident, state in VMEM) ---
    hy_seq, ay_seq = adapting_rnn_sequence(inputs, internals, h0, a0,
                                           w_cat, bias2d)
    hy_seq, ay_seq = jax.block_until_ready((hy_seq, ay_seq))

    hy_ref, ay_ref = reference_sequence(inputs, internals, h0, a0,
                                        weight_ih, weight_hh, bias)
    assert jnp.allclose(hy_seq, hy_ref, atol=1e-4, rtol=1e-4), "sequence hy mismatch"
    assert jnp.allclose(ay_seq, ay_ref, atol=1e-4, rtol=1e-4), "sequence ay mismatch"

    print("KERNEL_OK")
</pallas_src>

<mosaic_0001>
module attributes {stable_mosaic.version = 11 : i64} {
  func.func @_adapting_rnn_seq_kernel(%arg0: i32, %arg1: i32, %arg2: memref<1x8x32xf32, #tpu.memory_space<vmem>>, %arg3: memref<1x8x32xf32, #tpu.memory_space<vmem>>, %arg4: memref<8x32xf32, #tpu.memory_space<vmem>>, %arg5: memref<8x32xf32, #tpu.memory_space<vmem>>, %arg6: memref<64x32xf32, #tpu.memory_space<vmem>>, %arg7: memref<1x32xf32, #tpu.memory_space<vmem>>, %arg8: memref<1x8x64xf32, #tpu.memory_space<vmem>>, %arg9: memref<8x64xf32, #tpu.memory_space<vmem>>, %arg10: memref<8x32xf32, #tpu.memory_space<vmem>>) attributes {dimension_semantics = [#tpu.dimension_semantics<parallel>, #tpu.dimension_semantics<arbitrary>], iteration_bounds = array<i64: 1, 1>, scalar_prefetch = 0 : i64, scratch_operands = 2 : i64, tpu.core_type = #tpu.core_type<tc>, window_params = [{transform_indices = @transform_0, window_bounds = array<i64: 1, 8, 32>}, {transform_indices = @transform_1, window_bounds = array<i64: 1, 8, 32>}, {transform_indices = @transform_2, window_bounds = array<i64: 8, 32>}, {transform_indices = @transform_3, window_bounds = array<i64: 8, 32>}, {pipeline_mode = #tpu.pipeline_mode<synchronous>, transform_indices = @transform_4, window_bounds = array<i64: 64, 32>}, {pipeline_mode = #tpu.pipeline_mode<synchronous>, transform_indices = @transform_5, window_bounds = array<i64: 1, 32>}, {transform_indices = @transform_6, window_bounds = array<i64: 1, 8, 64>}]} {
    %c0_i32 = arith.constant 0 : i32
    %0 = arith.cmpi eq, %arg1, %c0_i32 : i32
    %1 = arith.extui %0 : i1 to i32
    %c0_i32_0 = arith.constant 0 : i32
    %2 = arith.cmpi ne, %1, %c0_i32_0 : i32
    scf.if %2 {
      %c0_30 = arith.constant 0 : index
      %c0_31 = arith.constant 0 : index
      %33 = vector.load %arg4[%c0_30, %c0_31] : memref<8x32xf32, #tpu.memory_space<vmem>>, vector<8x32xf32>
      %c0_32 = arith.constant 0 : index
      %c32_33 = arith.constant 32 : index
      %34 = vector.load %arg9[%c0_32, %c32_33] : memref<8x64xf32, #tpu.memory_space<vmem>>, vector<8x32xf32>
      tpu.vector_store %arg9[%c0_32, %c32_33], %33 {strides = array<i32>} : memref<8x64xf32, #tpu.memory_space<vmem>>, vector<8x32xf32>,
      %c0_34 = arith.constant 0 : index
      %c0_35 = arith.constant 0 : index
      %35 = vector.load %arg5[%c0_34, %c0_35] : memref<8x32xf32, #tpu.memory_space<vmem>>, vector<8x32xf32>
      %c0_36 = arith.constant 0 : index
      %c0_37 = arith.constant 0 : index
      %36 = vector.load %arg10[%c0_36, %c0_37] : memref<8x32xf32, #tpu.memory_space<vmem>>, vector<8x32xf32>
      tpu.vector_store %arg10[%c0_36, %c0_37], %35 {strides = array<i32>} : memref<8x32xf32, #tpu.memory_space<vmem>>, vector<8x32xf32>,
    } else {
    }
    %c0 = arith.constant 0 : index
    %c0_1 = arith.constant 0 : index
    %c0_2 = arith.constant 0 : index
    %3 = vector.load %arg2[%c0, %c0_1, %c0_2] : memref<1x8x32xf32, #tpu.memory_space<vmem>>, vector<1x8x32xf32>
    %4 = vector.shape_cast %3 : vector<1x8x32xf32> to vector<8x32xf32>
    %c0_3 = arith.constant 0 : index
    %c0_4 = arith.constant 0 : index
    %5 = vector.load %arg9[%c0_3, %c0_4] : memref<8x64xf32, #tpu.memory_space<vmem>>, vector<8x32xf32>
    tpu.vector_store %arg9[%c0_3, %c0_4], %4 {strides = array<i32>} : memref<8x64xf32, #tpu.memory_space<vmem>>, vector<8x32xf32>,
    %c0_5 = arith.constant 0 : index
    %c32 = arith.constant 32 : index
    %6 = vector.load %arg9[%c0_5, %c32] : memref<8x64xf32, #tpu.memory_space<vmem>>, vector<8x32xf32>
    %c0_6 = arith.constant 0 : index
    %c0_7 = arith.constant 0 : index
    %7 = vector.load %arg10[%c0_6, %c0_7] : memref<8x32xf32, #tpu.memory_space<vmem>>, vector<8x32xf32>
    %c0_8 = arith.constant 0 : index
    %c0_9 = arith.constant 0 : index
    %8 = vector.load %arg9[%c0_8, %c0_9] : memref<8x64xf32, #tpu.memory_space<vmem>>, vector<8x64xf32>
    %c0_10 = arith.constant 0 : index
    %c0_11 = arith.constant 0 : index
    %9 = vector.load %arg6[%c0_10, %c0_11] : memref<64x32xf32, #tpu.memory_space<vmem>>, vector<64x32xf32>
    %cst = arith.constant dense<0.000000e+00> : vector<8x32xf32>
    %10 = tpu.matmul %8, %9, %cst {dimension_numbers = #tpu.dot_dimension_numbers<[1], [0], [0], [1], [0, 0, 1, 1], [], []>} : vector<8x64xf32>, vector<64x32xf32>, vector<8x32xf32> -> vector<8x32xf32>
    %cst_12 = arith.constant 8.750000e-01 : f32
    %11 = vector.broadcast %cst_12 : f32 to vector<8x32xf32>
    %12 = arith.mulf %7, %11 : vector<8x32xf32>
    %cst_13 = arith.constant 3.750000e-02 : f32
    %13 = vector.broadcast %cst_13 : f32 to vector<8x32xf32>
    %14 = arith.mulf %13, %6 : vector<8x32xf32>
    %15 = arith.addf %12, %14 : vector<8x32xf32>
    %c0_14 = arith.constant 0 : index
    %c0_15 = arith.constant 0 : index
    %c0_16 = arith.constant 0 : index
    %16 = vector.load %arg3[%c0_14, %c0_15, %c0_16] : memref<1x8x32xf32, #tpu.memory_space<vmem>>, vector<1x8x32xf32>
    %17 = vector.shape_cast %16 : vector<1x8x32xf32> to vector<8x32xf32>
    %18 = arith.addf %10, %17 : vector<8x32xf32>
    %c0_17 = arith.constant 0 : index
    %c0_18 = arith.constant 0 : index
    %19 = vector.load %arg7[%c0_17, %c0_18] : memref<1x32xf32, #tpu.memory_space<vmem>>, vector<1x32xf32>
    %20 = vector.broadcast %19 : vector<1x32xf32> to vector<8x32xf32>
    %21 = arith.addf %18, %20 : vector<8x32xf32>
    %22 = arith.subf %21, %7 : vector<8x32xf32>
    %cst_19 = arith.constant 0.000000e+00 : f32
    %23 = vector.broadcast %cst_19 : f32 to vector<8x32xf32>
    %24 = arith.maximumf %22, %23 : vector<8x32xf32>
    %c0_20 = arith.constant 0 : index
    %c0_21 = arith.constant 0 : index
    %c0_22 = arith.constant 0 : index
    %25 = vector.load %arg8[%c0_20, %c0_21, %c0_22] : memref<1x8x64xf32, #tpu.memory_space<vmem>>, vector<1x8x32xf32>
    %26 = vector.shape_cast %25 : vector<1x8x32xf32> to vector<8x32xf32>
    %27 = vector.shape_cast %24 : vector<8x32xf32> to vector<1x8x32xf32>
    tpu.vector_store %arg8[%c0_20, %c0_21, %c0_22], %27 {strides = array<i32>} : memref<1x8x64xf32, #tpu.memory_space<vmem>>, vector<1x8x32xf32>,
    %c0_23 = arith.constant 0 : index
    %c0_24 = arith.constant 0 : index
    %c32_25 = arith.constant 32 : index
    %28 = vector.load %arg8[%c0_23, %c0_24, %c32_25] : memref<1x8x64xf32, #tpu.memory_space<vmem>>, vector<1x8x32xf32>
    %29 = vector.shape_cast %28 : vector<1x8x32xf32> to vector<8x32xf32>
    %30 = vector.shape_cast %15 : vector<8x32xf32> to vector<1x8x32xf32>
    tpu.vector_store %arg8[%c0_23, %c0_24, %c32_25], %30 {strides = array<i32>} : memref<1x8x64xf32, #tpu.memory_space<vmem>>, vector<1x8x32xf32>,
    %c0_26 = arith.constant 0 : index
    %c32_27 = arith.constant 32 : index
    %31 = vector.load %arg9[%c0_26, %c32_27] : memref<8x64xf32, #tpu.memory_space<vmem>>, vector<8x32xf32>
    tpu.vector_store %arg9[%c0_26, %c32_27], %24 {strides = array<i32>} : memref<8x64xf32, #tpu.memory_space<vmem>>, vector<8x32xf32>,
    %c0_28 = arith.constant 0 : index
    %c0_29 = arith.constant 0 : index
    %32 = vector.load %arg10[%c0_28, %c0_29] : memref<8x32xf32, #tpu.memory_space<vmem>>, vector<8x32xf32>
    tpu.vector_store %arg10[%c0_28, %c0_29], %15 {strides = array<i32>} : memref<8x32xf32, #tpu.memory_space<vmem>>, vector<8x32xf32>,
    return
  }
  func.func @transform_0(%arg0: i32, %arg1: i32) -> (i32, i32, i32) {
    %c0_i32 = arith.constant 0 : i32
    %c0_i32_0 = arith.constant 0 : i32
    return %arg1, %arg0, %c0_i32 : i32, i32, i32
  }
  func.func @transform_1(%arg0: i32, %arg1: i32) -> (i32, i32, i32) {
    %c0_i32 = arith.constant 0 : i32
    %c0_i32_0 = arith.constant 0 : i32
    return %arg1, %arg0, %c0_i32 : i32, i32, i32
  }
  func.func @transform_2(%arg0: i32, %arg1: i32) -> (i32, i32) {
    %c0_i32 = arith.constant 0 : i32
    %c0_i32_0 = arith.constant 0 : i32
    return %arg0, %c0_i32 : i32, i32
  }
  func.func @transform_3(%arg0: i32, %arg1: i32) -> (i32, i32) {
    %c0_i32 = arith.constant 0 : i32
    %c0_i32_0 = arith.constant 0 : i32
    return %arg0, %c0_i32 : i32, i32
  }
  func.func @transform_4(%arg0: i32, %arg1: i32) -> (i32, i32) {
    %c0_i32 = arith.constant 0 : i32
    %c0_i32_0 = arith.constant 0 : i32
    %c0_i32_1 = arith.constant 0 : i32
    return %c0_i32, %c0_i32_0 : i32, i32
  }
  func.func @transform_5(%arg0: i32, %arg1: i32) -> (i32, i32) {
    %c0_i32 = arith.constant 0 : i32
    %c0_i32_0 = arith.constant 0 : i32
    %c0_i32_1 = arith.constant 0 : i32
    return %c0_i32, %c0_i32_0 : i32, i32
  }
  func.func @transform_6(%arg0: i32, %arg1: i32) -> (i32, i32, i32) {
    %c0_i32 = arith.constant 0 : i32
    %c0_i32_0 = arith.constant 0 : i32
    return %arg1, %arg0, %c0_i32 : i32, i32, i32
  }
}

</mosaic_0001>

<llo_original>
// kernel: tpu_custom_call.1
$region0: #{tpu_custom_call.1}
  #allocation0 [shape = 'u32[]', space=smem, size = 0x4, offset = 0x4, fixed_abs, tag = 'smem constant byte address 0x4 - core index']
  #allocation1 [shape = 'u32[144,128]{1,0:T(1,128)}', space=vmem, size = 0x12000, scoped, tag = 'internal scratch']
  #allocation2 [shape = 'f32[8,64]{1,0:T(8,128)}', space=vmem, size = 0x1000, scoped, tag = 'scratch operand']
  #allocation3 [shape = 'f32[8,32]{1,0:T(8,128)}', space=vmem, size = 0x1000, scoped, tag = 'scratch operand']
  %s0 = inlined_call_operand.vmem [shape: f32[1,8,32], index: 0, kind: input, shape index: {}]
  %s1 = inlined_call_operand.vmem [shape: f32[1,8,32], index: 1, kind: input, shape index: {}]
  %s2 = inlined_call_operand.vmem [shape: f32[8,32], index: 2, kind: input, shape index: {}]
  %s3 = inlined_call_operand.vmem [shape: f32[8,32], index: 3, kind: input, shape index: {}]
  %s4 = inlined_call_operand.vmem [shape: f32[64,32], index: 4, kind: input, shape index: {}]
  %s5 = inlined_call_operand.vmem [shape: f32[1,32], index: 5, kind: input, shape index: {}]
  %s6 = inlined_call_operand.hbm [shape: f32[1,8,64], index: 6, kind: output, shape index: {}]
  %s7 = sld [smem:[#allocation0]]
  $region38: #{tpu_custom_call.1} parent=0
    _
  %s9 = ssub.s32 1, %s7
  %s10 = scalar_select 0, %s9, %s7
  $region1: #{tpu_custom_call.1} parent=0
    #allocation4 [shape = 'u8[4096]{0}', space=vmem, size = 0x1000, scoped, tag = 'output window, operand 0, single buffered']
    #allocation5 [shape = 's32[1]{0}', space=sflag, size = 0x4, scoped, tag = 'scoped memory for tpu_custom_call.1']
    %11 = vsyncpa [#allocation5], 0
    // Predicated region
    $region2: #{tpu_custom_call.1} parent=1 // pred_check
      _
    $region3: #{tpu_custom_call.1} parent=1 // pred_check_branch
      %13 = sbr.rel (0) target = $region5
    $region4: #{tpu_custom_call.1} parent=1 // pred_region
      _
    $region5: #{tpu_custom_call.1} parent=1 // pred_fallthru
      _
    // Predicated region
    $region6: #{tpu_custom_call.1} parent=1 // pred_check
      _
    $region7: #{tpu_custom_call.1} parent=1 // pred_check_branch
      %15 = sbr.rel (0) target = $region9
    $region8: #{tpu_custom_call.1} parent=1 // pred_region
      _
    $region9: #{tpu_custom_call.1} parent=1 // pred_fallthru
      _
    // Predicated region
    $region10: #{tpu_custom_call.1} parent=1 // pred_check
      _
    $region11: #{tpu_custom_call.1} parent=1 // pred_check_branch
      %17 = sbr.rel (0) target = $region13
    $region12: #{tpu_custom_call.1} parent=1 // pred_region
      _
    $region13: #{tpu_custom_call.1} parent=1 // pred_fallthru
      _
    // Predicated region
    $region14: #{tpu_custom_call.1} parent=1 // pred_check
      _
    $region15: #{tpu_custom_call.1} parent=1 // pred_check_branch
      %19 = sbr.rel (0) target = $region17
    $region16: #{tpu_custom_call.1} parent=1 // pred_region
      _
    $region17: #{tpu_custom_call.1} parent=1 // pred_fallthru
      _
    // Predicated region
    $region18: #{tpu_custom_call.1} parent=1 // pred_check
      _
    $region19: #{tpu_custom_call.1} parent=1 // pred_check_branch
      %21 = sbr.rel (0) target = $region21
    $region20: #{tpu_custom_call.1} parent=1 // pred_region
      _
    $region21: #{tpu_custom_call.1} parent=1 // pred_fallthru
      _
    // Predicated region
    $region22: #{tpu_custom_call.1} parent=1 // pred_check
      _
    $region23: #{tpu_custom_call.1} parent=1 // pred_check_branch
      %23 = sbr.rel (0) target = $region25
    $region24: #{tpu_custom_call.1} parent=1 // pred_region
      _
    $region25: #{tpu_custom_call.1} parent=1 // pred_fallthru
      _
    %p24 = scmp.eq.s32.totalorder 0, 0
    // Predicated region
    $region26: #{tpu_custom_call.1} parent=1 // pred_check
      %p25 = pneg %p24
    $region27: #{tpu_custom_call.1} parent=1 // pred_check_branch
      %27 = sbr.rel (%p25) target = $region29
    $region28: #{tpu_custom_call.1} parent=1 // pred_region
      %v28 = vld [vmem:[%s2] sm:$0xff]
      %30 = vrot.lane.b32.xlu0 %v28, 32
      %v31 = vpop.permute.xlu0 %30
      %vm33 = vcmask 523520
      %34 = vst.msk [vmem:[#allocation2] sm:$0xff] %vm33, %v31
      %v35 = vld [vmem:[%s3] sm:$0xff]
      %vm36 = vcmask 261120
      %37 = vst.msk [vmem:[#allocation3] sm:$0xff] %vm36, %v35
    $region29: #{tpu_custom_call.1} parent=1 // pred_fallthru
      _
    %v38 = vld [vmem:[%s0] sm:$0xff]
    %vm39 = vcmask 261120
    %40 = vst.msk [vmem:[#allocation2] sm:$0xff] %vm39, %v38
    %v41 = vld [vmem:[#allocation2] sm:$0xff]
    %v42 = vld [vmem:[#allocation3] sm:$0xff]
    %v43 = vld [vmem:[%s4] sm:$0xff]
    %v44 = vld [vmem:[%s4 + $0x8] sm:$0xff]
    %v45 = vld [vmem:[%s4 + $0x10] sm:$0xff]
    %v46 = vld [vmem:[%s4 + $0x18] sm:$0xff]
    %v47 = vld [vmem:[%s4 + $0x20] sm:$0xff]
    %v48 = vld [vmem:[%s4 + $0x28] sm:$0xff]
    %v49 = vld [vmem:[%s4 + $0x30] sm:$0xff]
    %v50 = vld [vmem:[%s4 + $0x38] sm:$0xff]
    %v51 = vmul.f32 %v42, 0.875
    %v52 = vmul.f32 %v41, 0.0375
    %54 = vrot.lane.b32.xlu0 %v52, 96
    %v55 = vpop.permute.xlu0 %54
    %v57 = vadd.f32 %v51, %v55
    %v58 = vld [vmem:[%s1] sm:$0xff]
    %vm59 = vcmask 523264
    %v61 = vsel %vm59, %v41, 0
    %63 = vmatprep.subr.mxu0 0.0
    %64 = vmatpush1.msra.mxu0 0.0
    %65 = vmatprep.subr.mxu0 0.0
    %66 = vmatpush1.msra.mxu0 0.0
    %67 = vmatprep.subr.mxu0 0.0
    %68 = vmatpush1.msra.mxu0 0.0
    %69 = vmatprep.subr.mxu0 0.0
    %70 = vmatpush1.msra.mxu0 0.0
    %71 = vmatprep.subr.mxu0 0.0
    %72 = vmatpush1.msra.mxu0 0.0
    %73 = vmatprep.subr.mxu0 0.0
    %74 = vmatpush1.msra.mxu0 0.0
    %75 = vmatprep.subr.mxu0 0.0
    %76 = vmatpush1.msra.mxu0 0.0
    %77 = vmatprep.subr.mxu0 0.0
    %78 = vmatpush1.msra.mxu0 0.0
    %79 = vmatprep.subr.mxu0 0.0
    %80 = vmatpush1.msra.mxu0 %v50
    %81 = vmatprep.subr.mxu0 0.0
    %82 = vmatpush1.msra.mxu0 %v49
    %83 = vmatprep.subr.mxu0 0.0
    %84 = vmatpush1.msra.mxu0 %v48
    %85 = vmatprep.subr.mxu0 0.0
    %86 = vmatpush1.msra.mxu0 %v47
    %87 = vmatprep.subr.mxu0 0.0
    %88 = vmatpush1.msra.mxu0 %v46
    %89 = vmatprep.subr.mxu0 0.0
    %90 = vmatpush1.msra.mxu0 %v45
    %91 = vmatprep.subr.mxu0 0.0
    %92 = vmatpush1.msra.mxu0 %v44
    %93 = vmatprep.subr.mxu0 0.0
    %94 = vmatpush1.msra.mxu0 %v43
    %95 = vmatprep.subr.mxu0 0.0
    %96 = vmatpush2.msra.mxu0 0.0
    %97 = vmatprep.subr.mxu0 0.0
    %98 = vmatpush2.msra.mxu0 0.0
    %99 = vmatprep.subr.mxu0 0.0
    %100 = vmatpush2.msra.mxu0 0.0
    %101 = vmatprep.subr.mxu0 0.0
    %102 = vmatpush2.msra.mxu0 0.0
    %103 = vmatprep.subr.mxu0 0.0
    %104 = vmatpush2.msra.mxu0 0.0
    %105 = vmatprep.subr.mxu0 0.0
    %106 = vmatpush2.msra.mxu0 0.0
    %107 = vmatprep.subr.mxu0 0.0
    %108 = vmatpush2.msra.mxu0 0.0
    %109 = vmatprep.subr.mxu0 0.0
    %110 = vmatpush2.msra.mxu0 0.0
    %111 = vmatprep.subr.mxu0 0.0
    %112 = vmatpush2.msra.mxu0 0.0
    %113 = vmatprep.subr.mxu0 0.0
    %114 = vmatpush2.msra.mxu0 0.0
    %115 = vmatprep.subr.mxu0 0.0
    %116 = vmatpush2.msra.mxu0 0.0
    %117 = vmatprep.subr.mxu0 0.0
    %118 = vmatpush2.msra.mxu0 0.0
    %119 = vmatprep.subr.mxu0 0.0
    %120 = vmatpush2.msra.mxu0 0.0
    %121 = vmatprep.subr.mxu0 0.0
    %122 = vmatpush2.msra.mxu0 0.0
    %123 = vmatprep.subr.mxu0 0.0
    %124 = vmatpush2.msra.mxu0 0.0
    %125 = vmatprep.subr.mxu0 0.0
    %126 = vmatpush2.msra.mxu0 0.0
    %127 = vmatprep.mubr.f32.mxu0 0.0
    %128 = vmatmul.mubr.f32.gmra.mxu0 %v61
    %v129 = vpop.f32.mrf.mxu0
    %v130 = vadd.f32 %v58, %v129
    %v131 = vpop.f32.mrf.mxu0
    %132 = vdwg.mxu0
    %v133 = vld [vmem:[%s5] sm:$0x1]
    %v135 = vlaneseq
    %v136 = vshrl.u32 %v135, 7
    %v137 = vsub.s32 0, %v136
    %v138 = vrot.slane %v133, %v137
    %v140 = vadd.f32 %v130, %v138
    %v141 = vsub.f32 %v140, %v42
    %v142 = vmax.f32 %v141, 0.0
    %143 = vst.msk [vmem:[#allocation4] sm:$0xff] %vm39, %v142
    %145 = vrot.lane.b32.xlu0 %v57, 32
    %v146 = vpop.permute.xlu0 %145
    %vm148 = vcmask 523520
    %149 = vst.msk [vmem:[#allocation4] sm:$0xff] %vm148, %v146
    %151 = vrot.lane.b32.xlu0 %v142, 32
    %v152 = vpop.permute.xlu0 %151
    %154 = vst.msk [vmem:[#allocation2] sm:$0xff] %vm148, %v152
    %155 = vst.msk [vmem:[#allocation3] sm:$0xff] %vm39, %v57
    // Predicated region
    $region30: #{tpu_custom_call.1} parent=1 // pred_check
      _
    $region31: #{tpu_custom_call.1} parent=1 // pred_check_branch
      %157 = sbr.rel (0) target = $region33
    $region32: #{tpu_custom_call.1} parent=1 // pred_region
      %s159 = ssub.s32 128, 128
      %160 = vsyncadd [#allocation5], %s159
      %s162 = sshll.u32 [#allocation4], 4
      %s163 = int_to_ptr.vmem [resolvable:$true] %s162
      %165 = dma.vmem_to_hbm [thread:$0]  %s163, 128, %s6, [#allocation5]
    $region33: #{tpu_custom_call.1} parent=1 // pred_fallthru
      _
    // Predicated region
    $region34: #{tpu_custom_call.1} parent=1 // pred_check
      _
    $region35: #{tpu_custom_call.1} parent=1 // pred_check_branch
      %167 = sbr.rel (0) target = $region37
    $region36: #{tpu_custom_call.1} parent=1 // pred_region
      %168 = dma.done [#allocation5], 128
    $region37: #{tpu_custom_call.1} parent=1 // pred_fallthru
      _
    %169 = vsyncpa [#allocation5], 1

</llo_original>
